<compile_context>
chip_gen: v5e
topology: v5e:2x2
jax: 0.10.0
libtpu: 0.0.40
codegen_flags: <defaults>
</compile_context>

<pallas_src>
import functools
import math

import jax
import jax.numpy as jnp
from jax.experimental import pallas as pl
from jax.experimental.pallas import tpu as pltpu

_LN_EPS = 1e-5            # torch.nn.LayerNorm default
_ROW_TILE = 512           # rows of (B*L) per grid step for row-tiled kernels
_Q_TILE = 256             # query rows per grid step in attention
_MM_DTYPE = jnp.bfloat16  # matmul operand dtype (f32 accumulation)
_ACT_DTYPE = jnp.bfloat16 # inter-kernel activation dtype


def _bytes_of(dt):
    return 2 if dt in (jnp.bfloat16, jnp.float16) else 4


def _cparams(dim_sem, budget_bytes):
    """CompilerParams with an explicit scoped-VMEM budget (headroom included)."""
    limit = int(budget_bytes * 1.5) + (2 << 20)
    limit = max(limit, 16 << 20)
    limit = min(limit, 64 << 20)
    return pltpu.CompilerParams(dimension_semantics=dim_sem,
                                vmem_limit_bytes=limit)


def _layernorm_f32(z, g, b):
    mu = jnp.mean(z, axis=-1, keepdims=True)
    var = jnp.mean(jnp.square(z - mu), axis=-1, keepdims=True)
    return (z - mu) * jax.lax.rsqrt(var + _LN_EPS) * g + b


# ------------------- 1) fused QKV projection (two outputs) -------------------

def _qkv_kernel(x_ref, w_ref, b_ref, q_ref, kv_ref, *, d_model):
    x = x_ref[...].astype(_MM_DTYPE)
    y = jnp.dot(x, w_ref[...], preferred_element_type=jnp.float32) + b_ref[...]
    q_ref[...] = y[:, :d_model].astype(q_ref.dtype)
    kv_ref[...] = y[:, d_model:].astype(kv_ref.dtype)


def qkv_projection(x, w, b, *, tm=_ROW_TILE):
    """x: (M, D), w: (D, 3D), b: (3D,) -> (Q (M, D), KV (M, 2D)) in bf16."""
    M, D = x.shape
    N = w.shape[1]
    tm = min(tm, M)
    budget = (tm * D * _bytes_of(x.dtype) * 2 + D * N * 2 + N * 4 +
              tm * N * 2 * 2 + tm * N * 4)
    return pl.pallas_call(
        functools.partial(_qkv_kernel, d_model=D),
        out_shape=(jax.ShapeDtypeStruct((M, D), _ACT_DTYPE),
                   jax.ShapeDtypeStruct((M, 2 * D), _ACT_DTYPE)),
        grid=(pl.cdiv(M, tm),),
        in_specs=[
            pl.BlockSpec((tm, D), lambda i: (i, 0)),
            pl.BlockSpec((D, N), lambda i: (0, 0), pipeline_mode=pl.Buffered(1)),
            pl.BlockSpec((1, N), lambda i: (0, 0), pipeline_mode=pl.Buffered(1)),
        ],
        out_specs=(pl.BlockSpec((tm, D), lambda i: (i, 0)),
                   pl.BlockSpec((tm, 2 * D), lambda i: (i, 0))),
        compiler_params=_cparams(("parallel",), budget),
    )(x, w.astype(_MM_DTYPE), b.reshape(1, N).astype(jnp.float32))


# ----------------------------- plain linear ---------------------------------

def _linear_kernel(x_ref, w_ref, b_ref, o_ref):
    x = x_ref[...].astype(_MM_DTYPE)
    y = jnp.dot(x, w_ref[...], preferred_element_type=jnp.float32) + b_ref[...]
    o_ref[...] = y.astype(o_ref.dtype)


def linear(x, w, b, *, out_dtype=_ACT_DTYPE, tm=_ROW_TILE):
    """y = x @ w + b with bf16 operands / f32 accumulation."""
    M, K = x.shape
    N = w.shape[1]
    tm = min(tm, M)
    budget = (tm * K * _bytes_of(x.dtype) * 2 + K * N * 2 + N * 4 +
              tm * N * (2 * _bytes_of(out_dtype) + 4))
    return pl.pallas_call(
        _linear_kernel,
        out_shape=jax.ShapeDtypeStruct((M, N), out_dtype),
        grid=(pl.cdiv(M, tm),),
        in_specs=[
            pl.BlockSpec((tm, K), lambda i: (i, 0)),
            pl.BlockSpec((K, N), lambda i: (0, 0), pipeline_mode=pl.Buffered(1)),
            pl.BlockSpec((1, N), lambda i: (0, 0), pipeline_mode=pl.Buffered(1)),
        ],
        out_specs=pl.BlockSpec((tm, N), lambda i: (i, 0)),
        compiler_params=_cparams(("parallel",), budget),
    )(x, w.astype(_MM_DTYPE), b.reshape(1, N).astype(jnp.float32))


# ------------------------- unified attention core ----------------------------

def _mha_kernel(q_ref, kv_ref, o_ref, *, n_heads, scale, causal, tq):
    q = q_ref[0]            # (tq, D)  bf16
    kv = kv_ref[0]          # (S, 2D)  bf16
    D = q.shape[-1]
    S = kv.shape[0]
    E = D // n_heads
    if causal:
        q0 = pl.program_id(1) * tq
        row = q0 + jax.lax.broadcasted_iota(jnp.int32, (tq, S), 0)
        col = jax.lax.broadcasted_iota(jnp.int32, (tq, S), 1)
        cmask = col > row
    # TODO(synk): for E < 128, process heads in lane-aligned pairs to avoid
    #             masked partial stores on the per-head output slices.
    for h in range(n_heads):
        qh = q[:, h * E:(h + 1) * E]
        kh = kv[:, h * E:(h + 1) * E]
        vh = kv[:, D + h * E:D + (h + 1) * E]
        # QK^T without materializing a transpose: contract last dims directly.
        s = jax.lax.dot_general(qh, kh, (((1,), (1,)), ((), ())),
                                preferred_element_type=jnp.float32) * scale
        if causal:
            s = jnp.where(cmask, jnp.float32(-1e30), s)
        m = jnp.max(s, axis=-1, keepdims=True)
        p = jnp.exp(s - m)
        p = p / jnp.sum(p, axis=-1, keepdims=True)      # exact divide (parity)
        oh = jnp.dot(p.astype(_MM_DTYPE), vh, preferred_element_type=jnp.float32)
        o_ref[0, :, h * E:(h + 1) * E] = oh.astype(o_ref.dtype)


def mha(q, kv, n_heads, scale, causal, *, tq=_Q_TILE):
    """q: (B, L, D), kv: (B, S, 2D) -> (B, L, D).  Query-tiled, softmax in f32."""
    B, L, D = q.shape
    S = kv.shape[1]
    tq = min(tq, L)
    budget = (tq * D * 2 * 2 + S * 2 * D * 2 * 2 + tq * D * 2 * 2 +
              tq * S * 4 * 3 + tq * D * 4)
    return pl.pallas_call(
        functools.partial(_mha_kernel, n_heads=n_heads, scale=scale,
                          causal=causal, tq=tq),
        out_shape=jax.ShapeDtypeStruct((B, L, D), _ACT_DTYPE),
        grid=(B, pl.cdiv(L, tq)),
        in_specs=[
            pl.BlockSpec((1, tq, D), lambda b, i: (b, i, 0)),
            pl.BlockSpec((1, S, 2 * D), lambda b, i: (b, 0, 0)),
        ],
        out_specs=pl.BlockSpec((1, tq, D), lambda b, i: (b, i, 0)),
        compiler_params=_cparams(("parallel", "parallel"), budget),
    )(q, kv)


# -------- out-projection + residual + LayerNorm (+ fused cross-Q proj) -------

def _proj_ln_q_kernel(a_ref, wo_ref, bo_ref, r_ref, g_ref, b_ref,
                      wq_ref, bq_ref, x1_ref, q_ref):
    a = a_ref[...].astype(_MM_DTYPE)
    y = jnp.dot(a, wo_ref[...], preferred_element_type=jnp.float32) + bo_ref[...]
    z = r_ref[...].astype(jnp.float32) + y
    x1 = _layernorm_f32(z, g_ref[...], b_ref[...])
    x1_ref[...] = x1.astype(x1_ref.dtype)
    qc = jnp.dot(x1.astype(_MM_DTYPE), wq_ref[...],
                 preferred_element_type=jnp.float32) + bq_ref[...]
    q_ref[...] = qc.astype(q_ref.dtype)


def proj_add_layernorm_q(a, wo, bo, residual, gamma, beta, wq, bq, *, tm=_ROW_TILE):
    """x1 = LN(residual + a@wo + bo);  qc = x1 @ wq + bq   (two outputs)."""
    M, K = a.shape
    D = wo.shape[1]
    tm = min(tm, M)
    budget = (tm * K * 2 * 2 + K * D * 2 + D * D * 2 + 4 * D * 4 +
              tm * D * 4 * 2 + tm * D * 4 * 2 + tm * D * 2 * 2 + tm * D * 4 * 2)
    return pl.pallas_call(
        _proj_ln_q_kernel,
        out_shape=(jax.ShapeDtypeStruct((M, D), jnp.float32),
                   jax.ShapeDtypeStruct((M, D), _ACT_DTYPE)),
        grid=(pl.cdiv(M, tm),),
        in_specs=[
            pl.BlockSpec((tm, K), lambda i: (i, 0)),
            pl.BlockSpec((K, D), lambda i: (0, 0), pipeline_mode=pl.Buffered(1)),
            pl.BlockSpec((1, D), lambda i: (0, 0), pipeline_mode=pl.Buffered(1)),
            pl.BlockSpec((tm, D), lambda i: (i, 0)),
            pl.BlockSpec((1, D), lambda i: (0, 0), pipeline_mode=pl.Buffered(1)),
            pl.BlockSpec((1, D), lambda i: (0, 0), pipeline_mode=pl.Buffered(1)),
            pl.BlockSpec((D, D), lambda i: (0, 0), pipeline_mode=pl.Buffered(1)),
            pl.BlockSpec((1, D), lambda i: (0, 0), pipeline_mode=pl.Buffered(1)),
        ],
        out_specs=(pl.BlockSpec((tm, D), lambda i: (i, 0)),
                   pl.BlockSpec((tm, D), lambda i: (i, 0))),
        compiler_params=_cparams(("parallel",), budget),
    )(a, wo.astype(_MM_DTYPE), bo.reshape(1, D).astype(jnp.float32),
      residual, gamma.reshape(1, D).astype(jnp.float32),
      beta.reshape(1, D).astype(jnp.float32),
      wq.astype(_MM_DTYPE), bq.reshape(1, D).astype(jnp.float32))


def _proj_ln_kernel(a_ref, wo_ref, bo_ref, r_ref, g_ref, b_ref, o_ref):
    a = a_ref[...].astype(_MM_DTYPE)
    y = jnp.dot(a, wo_ref[...], preferred_element_type=jnp.float32) + bo_ref[...]
    z = r_ref[...].astype(jnp.float32) + y
    o_ref[...] = _layernorm_f32(z, g_ref[...], b_ref[...]).astype(o_ref.dtype)


def proj_add_layernorm(a, wo, bo, residual, gamma, beta, *, tm=_ROW_TILE):
    """LayerNorm(residual + a @ wo + bo)."""
    M, K = a.shape
    D = wo.shape[1]
    tm = min(tm, M)
    budget = (tm * K * 2 * 2 + K * D * 2 + 3 * D * 4 +
              tm * D * 4 * 2 + tm * D * 4 * 2 + tm * D * 4 * 2)
    return pl.pallas_call(
        _proj_ln_kernel,
        out_shape=jax.ShapeDtypeStruct((M, D), jnp.float32),
        grid=(pl.cdiv(M, tm),),
        in_specs=[
            pl.BlockSpec((tm, K), lambda i: (i, 0)),
            pl.BlockSpec((K, D), lambda i: (0, 0), pipeline_mode=pl.Buffered(1)),
            pl.BlockSpec((1, D), lambda i: (0, 0), pipeline_mode=pl.Buffered(1)),
            pl.BlockSpec((tm, D), lambda i: (i, 0)),
            pl.BlockSpec((1, D), lambda i: (0, 0), pipeline_mode=pl.Buffered(1)),
            pl.BlockSpec((1, D), lambda i: (0, 0), pipeline_mode=pl.Buffered(1)),
        ],
        out_specs=pl.BlockSpec((tm, D), lambda i: (i, 0)),
        compiler_params=_cparams(("parallel",), budget),
    )(a, wo.astype(_MM_DTYPE), bo.reshape(1, D).astype(jnp.float32),
      residual, gamma.reshape(1, D).astype(jnp.float32),
      beta.reshape(1, D).astype(jnp.float32))


# -------------------------- fused FFN + add + LN -----------------------------

def _ffn_ln_kernel(x_ref, w1_ref, b1_ref, w2_ref, b2_ref, g_ref, bb_ref, o_ref):
    x = x_ref[...].astype(jnp.float32)
    h = jnp.dot(x.astype(_MM_DTYPE), w1_ref[...],
                preferred_element_type=jnp.float32) + b1_ref[...]
    h = jnp.maximum(h, 0.0)
    y = jnp.dot(h.astype(_MM_DTYPE), w2_ref[...],
                preferred_element_type=jnp.float32) + b2_ref[...]
    z = x + y
    o_ref[...] = _layernorm_f32(z, g_ref[...], bb_ref[...]).astype(o_ref.dtype)


def ffn_add_layernorm(x, w1, b1, w2, b2, gamma, beta, *, tm=_ROW_TILE):
    """LayerNorm(x + relu(x@w1+b1)@w2+b2); d_ff activation never touches HBM."""
    M, D = x.shape
    F = w1.shape[1]
    tm = min(tm, M)
    budget = (tm * D * 4 * 2 + D * F * 2 + F * D * 2 + F * 4 + 3 * D * 4 +
              tm * D * 4 * 2 + tm * F * 4 * 2)
    return pl.pallas_call(
        _ffn_ln_kernel,
        out_shape=jax.ShapeDtypeStruct((M, D), jnp.float32),
        grid=(pl.cdiv(M, tm),),
        in_specs=[
            pl.BlockSpec((tm, D), lambda i: (i, 0)),
            pl.BlockSpec((D, F), lambda i: (0, 0), pipeline_mode=pl.Buffered(1)),
            pl.BlockSpec((1, F), lambda i: (0, 0), pipeline_mode=pl.Buffered(1)),
            pl.BlockSpec((F, D), lambda i: (0, 0), pipeline_mode=pl.Buffered(1)),
            pl.BlockSpec((1, D), lambda i: (0, 0), pipeline_mode=pl.Buffered(1)),
            pl.BlockSpec((1, D), lambda i: (0, 0), pipeline_mode=pl.Buffered(1)),
            pl.BlockSpec((1, D), lambda i: (0, 0), pipeline_mode=pl.Buffered(1)),
        ],
        out_specs=pl.BlockSpec((tm, D), lambda i: (i, 0)),
        compiler_params=_cparams(("parallel",), budget),
    )(x, w1.astype(_MM_DTYPE), b1.reshape(1, F).astype(jnp.float32),
      w2.astype(_MM_DTYPE), b2.reshape(1, D).astype(jnp.float32),
      gamma.reshape(1, D).astype(jnp.float32),
      beta.reshape(1, D).astype(jnp.float32))


# -------------------------------- module glue --------------------------------

def decoder_layer_forward(x, cross, params, self_attn_causal=True):
    """DecoderLayer.forward (x_mask=None, cross_mask=None, dropout=eval).

    self_attn_causal=True mirrors Informer's FullAttention(mask_flag=True)
    applying a TriangularCausalMask when attn_mask is None.
    """
    B, L, D = x.shape
    S = cross.shape[1]
    H = params["n_heads"]
    E = D // H
    scale = 1.0 / math.sqrt(E)

    x_flat = x.reshape(B * L, D)
    cross_flat = cross.reshape(B * S, D)

    # x = norm1(x + self_attention(x, x, x)); cross-Q projection fused in.
    sp = params["self_attn"]
    cp = params["cross_attn"]
    q_s, kv_s = qkv_projection(x_flat, sp["wqkv"], sp["bqkv"])
    sa = mha(q_s.reshape(B, L, D), kv_s.reshape(B, L, 2 * D),
             H, scale, self_attn_causal).reshape(B * L, D)
    x1, qc = proj_add_layernorm_q(sa, sp["wo"], sp["bo"], x_flat,
                                  params["norm1_g"], params["norm1_b"],
                                  cp["wq"], cp["bq"])

    # x = norm2(x + cross_attention(x, cross, cross))
    kvc = linear(cross_flat, cp["wkv"], cp["bkv"])
    ca = mha(qc.reshape(B, L, D), kvc.reshape(B, S, 2 * D),
             H, scale, False).reshape(B * L, D)
    x2 = proj_add_layernorm(ca, cp["wo"], cp["bo"], x1,
                            params["norm2_g"], params["norm2_b"])

    # y = conv2(relu(conv1(x.T))).T ; return norm3(x + y)  (conv1d k=1 == matmul)
    out = ffn_add_layernorm(x2, params["w1"], params["b1"],
                            params["w2"], params["b2"],
                            params["norm3_g"], params["norm3_b"])
    return out.reshape(B, L, D)


def init_params(key, d_model, d_ff, n_heads):
    keys = jax.random.split(key, 12)
    ki = iter(keys)

    def w(shape, scale=0.1):
        return (scale * jax.random.normal(next(ki), shape)).astype(jnp.float32)

    return {
        "n_heads": n_heads,
        "self_attn": {
            "wqkv": w((d_model, 3 * d_model)), "bqkv": jnp.zeros((3 * d_model,), jnp.float32),
            "wo": w((d_model, d_model)), "bo": jnp.zeros((d_model,), jnp.float32),
        },
        "cross_attn": {
            "wq": w((d_model, d_model)), "bq": jnp.zeros((d_model,), jnp.float32),
            "wkv": w((d_model, 2 * d_model)), "bkv": jnp.zeros((2 * d_model,), jnp.float32),
            "wo": w((d_model, d_model)), "bo": jnp.zeros((d_model,), jnp.float32),
        },
        # conv1: Conv1d(d_model -> d_ff, k=1)  => (d_model, d_ff) for x @ W
        "w1": w((d_model, d_ff)), "b1": w((d_ff,), 0.01),
        # conv2: Conv1d(d_ff -> d_model, k=1)
        "w2": w((d_ff, d_model)), "b2": w((d_model,), 0.01),
        "norm1_g": jnp.ones((d_model,), jnp.float32), "norm1_b": jnp.zeros((d_model,), jnp.float32),
        "norm2_g": jnp.ones((d_model,), jnp.float32), "norm2_b": jnp.zeros((d_model,), jnp.float32),
        "norm3_g": jnp.ones((d_model,), jnp.float32), "norm3_b": jnp.zeros((d_model,), jnp.float32),
    }


# ----------------------------- pure-JAX reference ----------------------------

def reference_forward(x, cross, params, self_attn_causal=True):
    H = params["n_heads"]
    B, L, D = x.shape
    E = D // H

    def ln(z, g, b):
        mu = z.mean(-1, keepdims=True)
        var = ((z - mu) ** 2).mean(-1, keepdims=True)
        return (z - mu) / jnp.sqrt(var + _LN_EPS) * g + b

    def attn(q, k, v, causal):
        qh = q.reshape(B, -1, H, E).transpose(0, 2, 1, 3)
        kh = k.reshape(B, -1, H, E).transpose(0, 2, 1, 3)
        vh = v.reshape(B, -1, H, E).transpose(0, 2, 1, 3)
        s = jnp.einsum("bhle,bhse->bhls", qh, kh) / math.sqrt(E)
        if causal:
            m = jnp.triu(jnp.ones((s.shape[-2], s.shape[-1]), bool), k=1)
            s = jnp.where(m, -1e30, s)
        p = jax.nn.softmax(s, axis=-1)
        o = jnp.einsum("bhls,bhse->bhle", p, vh)
        return o.transpose(0, 2, 1, 3).reshape(B, -1, D)

    sp, cp = params["self_attn"], params["cross_attn"]
    qkv = x @ sp["wqkv"] + sp["bqkv"]
    sa = attn(qkv[..., :D], qkv[..., D:2 * D], qkv[..., 2 * D:], self_attn_causal)
    x1 = ln(x + sa @ sp["wo"] + sp["bo"], params["norm1_g"], params["norm1_b"])
    qc = x1 @ cp["wq"] + cp["bq"]
    kvc = cross @ cp["wkv"] + cp["bkv"]
    ca = attn(qc, kvc[..., :D], kvc[..., D:], False)
    x2 = ln(x1 + ca @ cp["wo"] + cp["bo"], params["norm2_g"], params["norm2_b"])
    h = jnp.maximum(x2 @ params["w1"] + params["b1"], 0.0)
    y = h @ params["w2"] + params["b2"]
    return ln(x2 + y, params["norm3_g"], params["norm3_b"])


if __name__ == "__main__":
    B, L, S = 2, 8, 12
    d_model, n_heads = 32, 4
    d_ff = 4 * d_model

    key = jax.random.PRNGKey(0)
    kx, kc, kp = jax.random.split(key, 3)
    x = jax.random.normal(kx, (B, L, d_model), dtype=jnp.float32)
    cross = jax.random.normal(kc, (B, S, d_model), dtype=jnp.float32)
    params = init_params(kp, d_model, d_ff, n_heads)

    out = decoder_layer_forward(x, cross, params)
    out = jax.block_until_ready(out)

    assert out.shape == (B, L, d_model) and out.dtype == jnp.float32
    assert bool(jnp.all(jnp.isfinite(out)))

    ref = reference_forward(x, cross, params)
    # Tolerance accounts for bf16 matmul operands / bf16 inter-kernel
    # activations vs the pure-f32 reference (structural errors would be >>0.1).
    err = float(jnp.max(jnp.abs(out - ref)))
    assert err < 1e-1, f"max abs error vs reference: {err}"

    print("KERNEL_OK")
</pallas_src>

<mosaic_0001>
module attributes {stable_mosaic.version = 11 : i64} {
  func.func @_qkv_kernel(%arg0: i32, %arg1: memref<16x32xf32, #tpu.memory_space<vmem>>, %arg2: memref<32x96xbf16, #tpu.memory_space<vmem>>, %arg3: memref<1x96xf32, #tpu.memory_space<vmem>>, %arg4: memref<16x32xbf16, #tpu.memory_space<vmem>>, %arg5: memref<16x64xbf16, #tpu.memory_space<vmem>>) attributes {dimension_semantics = [#tpu.dimension_semantics<parallel>], iteration_bounds = array<i64: 1>, scalar_prefetch = 0 : i64, scratch_operands = 0 : i64, tpu.core_type = #tpu.core_type<tc>, window_params = [{transform_indices = @transform_0, window_bounds = array<i64: 16, 32>}, {pipeline_mode = #tpu.pipeline_mode<synchronous>, transform_indices = @transform_1, window_bounds = array<i64: 32, 96>}, {pipeline_mode = #tpu.pipeline_mode<synchronous>, transform_indices = @transform_2, window_bounds = array<i64: 1, 96>}, {transform_indices = @transform_3, window_bounds = array<i64: 16, 32>}, {transform_indices = @transform_4, window_bounds = array<i64: 16, 64>}]} {
    %c0 = arith.constant 0 : index
    %c0_0 = arith.constant 0 : index
    %0 = vector.load %arg1[%c0, %c0_0] : memref<16x32xf32, #tpu.memory_space<vmem>>, vector<16x32xf32>
    %1 = arith.truncf %0 : vector<16x32xf32> to vector<16x32xbf16>
    %c0_1 = arith.constant 0 : index
    %c0_2 = arith.constant 0 : index
    %2 = vector.load %arg2[%c0_1, %c0_2] : memref<32x96xbf16, #tpu.memory_space<vmem>>, vector<32x96xbf16>
    %cst = arith.constant dense<0.000000e+00> : vector<16x96xf32>
    %3 = tpu.matmul %1, %2, %cst {dimension_numbers = #tpu.dot_dimension_numbers<[1], [0], [0], [1], [0, 0, 1, 1], [], []>} : vector<16x32xbf16>, vector<32x96xbf16>, vector<16x96xf32> -> vector<16x96xf32>
    %c0_3 = arith.constant 0 : index
    %c0_4 = arith.constant 0 : index
    %4 = vector.load %arg3[%c0_3, %c0_4] : memref<1x96xf32, #tpu.memory_space<vmem>>, vector<1x96xf32>
    %5 = vector.broadcast %4 : vector<1x96xf32> to vector<16x96xf32>
    %6 = arith.addf %3, %5 : vector<16x96xf32>
    %7 = vector.extract_strided_slice %6 {offsets = [0, 0], sizes = [16, 32], strides = [1, 1]} : vector<16x96xf32> to vector<16x32xf32>
    %8 = arith.truncf %7 : vector<16x32xf32> to vector<16x32xbf16>
    %c0_5 = arith.constant 0 : index
    %c0_6 = arith.constant 0 : index
    %9 = vector.load %arg4[%c0_5, %c0_6] : memref<16x32xbf16, #tpu.memory_space<vmem>>, vector<16x32xbf16>
    tpu.vector_store %arg4[%c0_5, %c0_6], %8 {strides = array<i32>} : memref<16x32xbf16, #tpu.memory_space<vmem>>, vector<16x32xbf16>,
    %10 = vector.extract_strided_slice %6 {offsets = [0, 32], sizes = [16, 64], strides = [1, 1]} : vector<16x96xf32> to vector<16x64xf32>
    %11 = arith.truncf %10 : vector<16x64xf32> to vector<16x64xbf16>
    %c0_7 = arith.constant 0 : index
    %c0_8 = arith.constant 0 : index
    %12 = vector.load %arg5[%c0_7, %c0_8] : memref<16x64xbf16, #tpu.memory_space<vmem>>, vector<16x64xbf16>
    tpu.vector_store %arg5[%c0_7, %c0_8], %11 {strides = array<i32>} : memref<16x64xbf16, #tpu.memory_space<vmem>>, vector<16x64xbf16>,
    return
  }
  func.func @transform_0(%arg0: i32) -> (i32, i32) {
    %c0_i32 = arith.constant 0 : i32
    %c0_i32_0 = arith.constant 0 : i32
    return %arg0, %c0_i32 : i32, i32
  }
  func.func @transform_1(%arg0: i32) -> (i32, i32) {
    %c0_i32 = arith.constant 0 : i32
    %c0_i32_0 = arith.constant 0 : i32
    %c0_i32_1 = arith.constant 0 : i32
    return %c0_i32, %c0_i32_0 : i32, i32
  }
  func.func @transform_2(%arg0: i32) -> (i32, i32) {
    %c0_i32 = arith.constant 0 : i32
    %c0_i32_0 = arith.constant 0 : i32
    %c0_i32_1 = arith.constant 0 : i32
    return %c0_i32, %c0_i32_0 : i32, i32
  }
  func.func @transform_3(%arg0: i32) -> (i32, i32) {
    %c0_i32 = arith.constant 0 : i32
    %c0_i32_0 = arith.constant 0 : i32
    return %arg0, %c0_i32 : i32, i32
  }
  func.func @transform_4(%arg0: i32) -> (i32, i32) {
    %c0_i32 = arith.constant 0 : i32
    %c0_i32_0 = arith.constant 0 : i32
    return %arg0, %c0_i32 : i32, i32
  }
}

</mosaic_0001>

<llo_original>
// kernel: tpu_custom_call.1
$region0: #{tpu_custom_call.1}
  #allocation0 [shape = 'u32[]', space=smem, size = 0x4, offset = 0x4, fixed_abs, tag = 'smem constant byte address 0x4 - core index']
  #allocation1 [shape = 'u32[72,128]{1,0:T(1,128)}', space=vmem, size = 0x9000, scoped, tag = 'internal scratch']
  %s0 = inlined_call_operand.hbm [shape: f32[16,32], index: 0, kind: input, shape index: {}]
  %s1 = inlined_call_operand.hbm [shape: bf16[32,96], index: 1, kind: input, shape index: {}]
  %s2 = inlined_call_operand.vmem [shape: f32[1,96], index: 2, kind: input, shape index: {}]
  %s3 = inlined_call_operand.hbm [shape: bf16[16,32], index: 3, kind: output, shape index: {0}]
  %s4 = inlined_call_operand.hbm [shape: bf16[16,64], index: 4, kind: output, shape index: {1}]
  %5 = xla_tuple %s3, %s4
  %s6 = sld [smem:[#allocation0]]
  $region38: #{tpu_custom_call.1} parent=0
    _
  %s8 = ssub.s32 1, %s6
  %s9 = scalar_select 0, %s8, %s6
  $region1: #{tpu_custom_call.1} parent=0
    #allocation2 [shape = 'u8[8192]{0}', space=vmem, size = 0x2000, scoped, tag = 'input window, operand 0, single buffered']
    #allocation3 [shape = 's32[1]{0}', space=sflag, size = 0x4, scoped, tag = 'scoped memory for tpu_custom_call.1']
    #allocation4 [shape = 's32[1]{0}', space=sflag, size = 0x4, scoped, tag = 'scoped memory for tpu_custom_call.1']
    #allocation5 [shape = 'u8[8192]{0}', space=vmem, size = 0x2000, scoped, tag = 'input window, operand 1, single buffered']
    #allocation6 [shape = 's32[1]{0}', space=sflag, size = 0x4, scoped, tag = 'scoped memory for tpu_custom_call.1']
    #allocation7 [shape = 'u8[4096]{0}', space=vmem, size = 0x1000, scoped, tag = 'output window, operand 0, single buffered']
    #allocation8 [shape = 'u8[4096]{0}', space=vmem, size = 0x1000, scoped, tag = 'output window, operand 1, single buffered']
    #allocation9 [shape = 's32[1]{0}', space=sflag, size = 0x4, scoped, tag = 'scoped memory for tpu_custom_call.1']
    %10 = vsyncpa [#allocation3], 0
    %11 = vsyncpa [#allocation6], 0
    %12 = vsyncpa [#allocation4], 0
    %13 = vsyncpa [#allocation9], 0
    // Predicated region
    $region2: #{tpu_custom_call.1} parent=1 // pred_check
      _
    $region3: #{tpu_custom_call.1} parent=1 // pred_check_branch
      %15 = sbr.rel (0) target = $region5
    $region4: #{tpu_custom_call.1} parent=1 // pred_region
      %17 = vsyncadd [#allocation3], 0
      %s18 = sshll.u32 %s0, 4
      %s19 = int_to_ptr.hbm [resolvable:$true] %s18
      %s20 = sshll.u32 [#allocation2], 4
      %s21 = int_to_ptr.vmem [resolvable:$true] %s20
      %26 = dma.hbm_to_vmem [thread:$0]  %s19, 256, %s21, [#allocation3], 128, 128, 8
    $region5: #{tpu_custom_call.1} parent=1 // pred_fallthru
      _
    // Predicated region
    $region6: #{tpu_custom_call.1} parent=1 // pred_check
      _
    $region7: #{tpu_custom_call.1} parent=1 // pred_check_branch
      %28 = sbr.rel (0) target = $region9
    $region8: #{tpu_custom_call.1} parent=1 // pred_region
      %30 = vsyncadd [#allocation6], 0
      %s31 = sshll.u32 %s1, 4
      %s32 = int_to_ptr.hbm [resolvable:$true] %s31
      %s33 = sshll.u32 [#allocation5], 4
      %s34 = int_to_ptr.vmem [resolvable:$true] %s33
      %39 = dma.hbm_to_vmem [thread:$0]  %s32, 256, %s34, [#allocation6], 64, 64, 4
    $region9: #{tpu_custom_call.1} parent=1 // pred_fallthru
      _
    // Predicated region
    $region10: #{tpu_custom_call.1} parent=1 // pred_check
      _
    $region11: #{tpu_custom_call.1} parent=1 // pred_check_branch
      %41 = sbr.rel (0) target = $region13
    $region12: #{tpu_custom_call.1} parent=1 // pred_region
      _
    $region13: #{tpu_custom_call.1} parent=1 // pred_fallthru
      _
    // Predicated region
    $region14: #{tpu_custom_call.1} parent=1 // pred_check
      _
    $region15: #{tpu_custom_call.1} parent=1 // pred_check_branch
      %43 = sbr.rel (0) target = $region17
    $region16: #{tpu_custom_call.1} parent=1 // pred_region
      %45 = dma.done [#allocation3], 256
    $region17: #{tpu_custom_call.1} parent=1 // pred_fallthru
      _
    // Predicated region
    $region18: #{tpu_custom_call.1} parent=1 // pred_check
      _
    $region19: #{tpu_custom_call.1} parent=1 // pred_check_branch
      %47 = sbr.rel (0) target = $region21
    $region20: #{tpu_custom_call.1} parent=1 // pred_region
      %49 = dma.done [#allocation6], 256
    $region21: #{tpu_custom_call.1} parent=1 // pred_fallthru
      _
    %v51 = vld [vmem:[#allocation2] sm:$0xff]
    %v52 = vld [vmem:[#allocation2 + $0x8] sm:$0xff]
    %v53 = vpack.c.bf16 %v52, %v51
    %v54 = vld [vmem:[#allocation5] sm:$0xf]
    %v55 = vld [vmem:[#allocation5 + $0x4] sm:$0xf]
    %v56 = vld [vmem:[#allocation5 + $0x8] sm:$0xf]
    %v57 = vld [vmem:[#allocation5 + $0xc] sm:$0xf]
    %v58 = vld [vmem:[%s2] sm:$0x1]
    %v60 = vperm.slane %v58, 0
    %v66 = vunpack.c.l.b16 %v54
    %v67 = vunpack.c.l.b16 %v55
    %v68 = vunpack.c.l.b16 %v56
    %v69 = vunpack.c.l.b16 %v57
    %v70 = vpack.c.b16 %v67, %v66
    %v71 = vpack.c.b16 %v69, %v68
    %vm74 = vcmask 261120
    %v76 = vsel %vm74, %v53, 0
    %78 = vmatpush.bf16.msra.mxu0 0
    %79 = vmatpush.bf16.msra.mxu0 0
    %80 = vmatpush.bf16.msra.mxu0 0
    %81 = vmatpush.bf16.msra.mxu0 0
    %82 = vmatpush.bf16.msra.mxu0 0
    %83 = vmatpush.bf16.msra.mxu0 0
    %84 = vmatpush.bf16.msra.mxu0 %v71
    %85 = vmatpush.bf16.msra.mxu0 %v70
    %86 = vmatmul.bf16.gmra.mxu0 %v76
    %v87 = vpop.f32.mrf.mxu0
    %v88 = vadd.f32 %v60, %v87
    %v89 = vpop.f32.mrf.mxu0
    %v90 = vadd.f32 %v60, %v89
    %91 = vdwg.mxu0
    %v92 = vpack.c.bf16 %v88, %v88
    %v93 = vpack.c.bf16 %v90, %v90
    %vm94 = vcmask 257024
    %95 = vst.msk [vmem:[#allocation7] sm:$0xf] %vm94, %v92
    %96 = vst.msk [vmem:[#allocation7 + $0x4] sm:$0xf] %vm94, %v93
    %99 = vrot.lane.b32.xlu0 %v92, 96
    %v100 = vpop.permute.xlu0 %99
    %101 = vrot.lane.b32.xlu0 %v93, 96
    %v102 = vpop.permute.xlu0 %101
    %vm105 = vcmask 519168
    %106 = vst.msk [vmem:[#allocation8] sm:$0xf] %vm105, %v100
    %107 = vst.msk [vmem:[#allocation8 + $0x4] sm:$0xf] %vm105, %v102
    // Predicated region
    $region22: #{tpu_custom_call.1} parent=1 // pred_check
      _
    $region23: #{tpu_custom_call.1} parent=1 // pred_check_branch
      %109 = sbr.rel (0) target = $region25
    $region24: #{tpu_custom_call.1} parent=1 // pred_region
      %111 = vsyncadd [#allocation4], 0
      %s112 = sshll.u32 [#allocation7], 4
      %s113 = int_to_ptr.vmem [resolvable:$true] %s112
      %s114 = sshll.u32 %s3, 4
      %s115 = int_to_ptr.hbm [resolvable:$true] %s114
      %120 = dma.vmem_to_hbm [thread:$0]  %s113, 128, %s115, [#allocation4], 64, 64, 4
    $region25: #{tpu_custom_call.1} parent=1 // pred_fallthru
      _
    // Predicated region
    $region26: #{tpu_custom_call.1} parent=1 // pred_check
      _
    $region27: #{tpu_custom_call.1} parent=1 // pred_check_branch
      %122 = sbr.rel (0) target = $region29
    $region28: #{tpu_custom_call.1} parent=1 // pred_region
      %124 = vsyncadd [#allocation9], 0
      %s125 = sshll.u32 [#allocation8], 4
      %s126 = int_to_ptr.vmem [resolvable:$true] %s125
      %s127 = sshll.u32 %s4, 4
      %s128 = int_to_ptr.hbm [resolvable:$true] %s127
      %133 = dma.vmem_to_hbm [thread:$0]  %s126, 128, %s128, [#allocation9], 64, 64, 4
    $region29: #{tpu_custom_call.1} parent=1 // pred_fallthru
      _
    // Predicated region
    $region30: #{tpu_custom_call.1} parent=1 // pred_check
      _
    $region31: #{tpu_custom_call.1} parent=1 // pred_check_branch
      %135 = sbr.rel (0) target = $region33
    $region32: #{tpu_custom_call.1} parent=1 // pred_region
      %137 = dma.done [#allocation4], 128
    $region33: #{tpu_custom_call.1} parent=1 // pred_fallthru
      _
    // Predicated region
    $region34: #{tpu_custom_call.1} parent=1 // pred_check
      _
    $region35: #{tpu_custom_call.1} parent=1 // pred_check_branch
      %139 = sbr.rel (0) target = $region37
    $region36: #{tpu_custom_call.1} parent=1 // pred_region
      %141 = dma.done [#allocation9], 128
    $region37: #{tpu_custom_call.1} parent=1 // pred_fallthru
      _
    %142 = vsyncpa [#allocation3], 1
    %143 = vsyncpa [#allocation6], 1
    %144 = vsyncpa [#allocation4], 1
    %145 = vsyncpa [#allocation9], 1

</llo_original>
